<compile_context>
chip_gen: v7x
topology: tpu7x:2x2x1
jax: 0.10.0
libtpu: 0.0.40
codegen_flags: <defaults>
</compile_context>

<pallas_src>
import functools

import jax
import jax.numpy as jnp
from jax.experimental import pallas as pl
from jax.experimental.pallas import tpu as pltpu


def _meanpool_kernel(enc_ref, out_ref, acc_ref, *, inv_s, s_total, t_s, needs_mask):
    """enc_ref: (tS, tF) slab of the flattened [S, F] encoder outputs.
    out_ref: (1, tF) pooled output block (resident across the S grid axis).
    acc_ref: (1, tF) f32 running-sum scratch.
    """
    s = pl.program_id(1)  # grid = (F_blocks, S_blocks); S is the reduction axis

    @pl.when(s == 0)
    def _init():
        acc_ref[...] = jnp.zeros_like(acc_ref)

    x = enc_ref[...].astype(jnp.float32)  # (tS, tF)
    if needs_mask:
        # Last S-tile may run past S; zero out the out-of-range rows.
        row = jax.lax.broadcasted_iota(jnp.int32, x.shape, 0) + s * t_s
        x = jnp.where(row < s_total, x, 0.0)

    # Per-slab accumulation: running sum now, single 1/S scale at the end.
    acc_ref[...] += jnp.sum(x, axis=0, keepdims=True)

    @pl.when(s == pl.num_programs(1) - 1)
    def _finalize():
        out_ref[...] = (acc_ref[...] * jnp.float32(inv_s)).astype(out_ref.dtype)


def mean_pool(hidden, encoder_outputs, *, tile_budget_bytes=2 * 1024 * 1024):
    """hidden: [B, Hd] (only its batch dim is used); encoder_outputs: [S, B, H].

    Returns (output [B, H], alpha [B, S]) matching the PyTorch MeanPool module.
    """
    S, B, H = encoder_outputs.shape
    Bh = hidden.shape[0]
    assert Bh == B, "batch dims of hidden and encoder_outputs must match"

    F = B * H
    enc2d = encoder_outputs.reshape(S, F)  # lane-dense last dim
    itemsize = enc2d.dtype.itemsize

    # --- F (lane) tiling: full dim if small, else multiples of 128. ---------
    if F <= 512:
        t_f = F                      # block == full dim is always legal
    else:
        t_f = 512                    # multiple of 128; partial last block OK
    g_f = pl.cdiv(F, t_f)

    # --- S (reduction) tiling: biggest multiple of 8 under the byte budget. -
    rows = max(8, tile_budget_bytes // (t_f * itemsize))
    if rows >= S:
        t_s = S                      # single S block (full dim -> legal)
    else:
        t_s = min(1024, (rows // 8) * 8)
    g_s = pl.cdiv(S, t_s)
    needs_mask = (S % t_s) != 0

    kernel = functools.partial(
        _meanpool_kernel,
        inv_s=1.0 / S,
        s_total=S,
        t_s=t_s,
        needs_mask=needs_mask,
    )

    pooled2d = pl.pallas_call(
        kernel,
        out_shape=jax.ShapeDtypeStruct((1, F), encoder_outputs.dtype),
        grid_spec=pltpu.PrefetchScalarGridSpec(
            num_scalar_prefetch=0,
            grid=(g_f, g_s),
            in_specs=[pl.BlockSpec((t_s, t_f), lambda f, s: (s, f))],
            out_specs=pl.BlockSpec((1, t_f), lambda f, s: (0, f)),
            scratch_shapes=[pltpu.VMEM((1, t_f), jnp.float32)],
        ),
        compiler_params=pltpu.CompilerParams(
            dimension_semantics=("parallel", "arbitrary"),
        ),
    )(enc2d)

    output = pooled2d.reshape(B, H)

    # alpha = softmax(ones(B, S), -1) == 1/S exactly; no kernel work needed.
    alpha = jnp.full((Bh, S), 1.0 / S, dtype=jnp.float32)
    return output, alpha


if __name__ == "__main__":
    key = jax.random.PRNGKey(0)
    k1, k2 = jax.random.split(key)

    S, B, H, Hd = 8, 2, 32, 32
    encoder_outputs = jax.random.normal(k1, (S, B, H), dtype=jnp.float32)
    hidden = jax.random.normal(k2, (B, Hd), dtype=jnp.float32)

    output, alpha = mean_pool(hidden, encoder_outputs)
    jax.block_until_ready((output, alpha))

    # sanity checks against plain-JAX reference
    ref_out = jnp.mean(encoder_outputs, axis=0)
    ref_alpha = jax.nn.softmax(jnp.ones((B, S), jnp.float32), axis=-1)
    assert output.shape == (B, H) and alpha.shape == (B, S)
    assert jnp.allclose(output, ref_out, atol=1e-5, rtol=1e-5)
    assert jnp.allclose(alpha, ref_alpha, atol=1e-6, rtol=1e-6)

    print("KERNEL_OK")
</pallas_src>

<mosaic_0001>
module attributes {stable_mosaic.version = 11 : i64} {
  func.func @_meanpool_kernel(%arg0: i32, %arg1: i32, %arg2: memref<8x64xf32, #tpu.memory_space<vmem>>, %arg3: memref<1x64xf32, #tpu.memory_space<vmem>>, %arg4: memref<1x64xf32, #tpu.memory_space<vmem>>) attributes {dimension_semantics = [#tpu.dimension_semantics<parallel>, #tpu.dimension_semantics<arbitrary>], iteration_bounds = array<i64: 1, 1>, scalar_prefetch = 0 : i64, scratch_operands = 1 : i64, tpu.core_type = #tpu.core_type<tc>, window_params = [{transform_indices = @transform_0, window_bounds = array<i64: 8, 64>}, {transform_indices = @transform_1, window_bounds = array<i64: 1, 64>}]} {
    %c0_i32 = arith.constant 0 : i32
    %0 = arith.cmpi eq, %arg1, %c0_i32 : i32
    %1 = arith.extui %0 : i1 to i32
    %c0_i32_0 = arith.constant 0 : i32
    %2 = arith.cmpi ne, %1, %c0_i32_0 : i32
    scf.if %2 {
      %cst_8 = arith.constant 0.000000e+00 : f32
      %12 = vector.broadcast %cst_8 : f32 to vector<1x64xf32>
      %c0_9 = arith.constant 0 : index
      %c0_10 = arith.constant 0 : index
      %13 = vector.load %arg4[%c0_9, %c0_10] : memref<1x64xf32, #tpu.memory_space<vmem>>, vector<1x64xf32>
      tpu.vector_store %arg4[%c0_9, %c0_10], %12 {strides = array<i32>} : memref<1x64xf32, #tpu.memory_space<vmem>>, vector<1x64xf32>,
    } else {
    }
    %c0 = arith.constant 0 : index
    %c0_1 = arith.constant 0 : index
    %3 = vector.load %arg2[%c0, %c0_1] : memref<8x64xf32, #tpu.memory_space<vmem>>, vector<8x64xf32>
    %c0_2 = arith.constant 0 : index
    %c0_3 = arith.constant 0 : index
    %4 = vector.load %arg4[%c0_2, %c0_3] : memref<1x64xf32, #tpu.memory_space<vmem>>, vector<1x64xf32>
    %cst = arith.constant dense<0.000000e+00> : vector<64xf32>
    %5 = vector.multi_reduction <add>, %3, %cst [0] : vector<8x64xf32> to vector<64xf32>
    %6 = vector.shape_cast %5 : vector<64xf32> to vector<1x64xf32>
    %7 = arith.addf %4, %6 : vector<1x64xf32>
    %c0_4 = arith.constant 0 : index
    %c0_5 = arith.constant 0 : index
    %8 = vector.load %arg4[%c0_4, %c0_5] : memref<1x64xf32, #tpu.memory_space<vmem>>, vector<1x64xf32>
    tpu.vector_store %arg4[%c0_4, %c0_5], %7 {strides = array<i32>} : memref<1x64xf32, #tpu.memory_space<vmem>>, vector<1x64xf32>,
    %c0_i32_6 = arith.constant 0 : i32
    %9 = arith.cmpi eq, %arg1, %c0_i32_6 : i32
    %10 = arith.extui %9 : i1 to i32
    %c0_i32_7 = arith.constant 0 : i32
    %11 = arith.cmpi ne, %10, %c0_i32_7 : i32
    scf.if %11 {
      %c0_8 = arith.constant 0 : index
      %c0_9 = arith.constant 0 : index
      %12 = vector.load %arg4[%c0_8, %c0_9] : memref<1x64xf32, #tpu.memory_space<vmem>>, vector<1x64xf32>
      %cst_10 = arith.constant 1.250000e-01 : f32
      %13 = vector.broadcast %cst_10 : f32 to vector<1x64xf32>
      %14 = arith.mulf %12, %13 : vector<1x64xf32>
      %c0_11 = arith.constant 0 : index
      %c0_12 = arith.constant 0 : index
      %15 = vector.load %arg3[%c0_11, %c0_12] : memref<1x64xf32, #tpu.memory_space<vmem>>, vector<1x64xf32>
      tpu.vector_store %arg3[%c0_11, %c0_12], %14 {strides = array<i32>} : memref<1x64xf32, #tpu.memory_space<vmem>>, vector<1x64xf32>,
    } else {
    }
    return
  }
  func.func @transform_0(%arg0: i32, %arg1: i32) -> (i32, i32) {
    %c0_i32 = arith.constant 0 : i32
    return %arg1, %arg0 : i32, i32
  }
  func.func @transform_1(%arg0: i32, %arg1: i32) -> (i32, i32) {
    %c0_i32 = arith.constant 0 : i32
    %c0_i32_0 = arith.constant 0 : i32
    return %c0_i32, %arg0 : i32, i32
  }
}

</mosaic_0001>

<llo_original>
// kernel: tpu_custom_call.1
$region0: #{tpu_custom_call.1}
  #allocation0 [shape = 'u32[]', space=smem, size = 0x4, offset = 0x4, fixed_abs, tag = 'smem constant byte address 0x4 - core index']
  #allocation1 [shape = 'u32[144,128]{1,0:T(1,128)}', space=vmem, size = 0x12000, scoped, tag = 'internal scratch']
  #allocation2 [shape = 'f32[1,64]{1,0:T(1,128)}', space=vmem, size = 0x200, scoped, tag = 'scratch operand']
  %s0 = inlined_call_operand.hbm [shape: f32[8,64], index: 0, kind: input, shape index: {}]
  %s1 = inlined_call_operand.hbm [shape: f32[1,64], index: 1, kind: output, shape index: {}]
  %s2 = sld [smem:[#allocation0]]
  $region26: #{tpu_custom_call.1} parent=0
    _
  %s4 = ssub.s32 1, %s2
  %s5 = scalar_select 0, %s4, %s2
  $region1: #{tpu_custom_call.1} parent=0
    #allocation3 [shape = 'u8[4096]{0}', space=vmem, size = 0x1000, scoped, tag = 'input window, operand 0, single buffered']
    #allocation4 [shape = 's32[1]{0}', space=sflag, size = 0x4, scoped, tag = 'scoped memory for tpu_custom_call.1']
    #allocation5 [shape = 's32[1]{0}', space=sflag, size = 0x4, scoped, tag = 'scoped memory for tpu_custom_call.1']
    #allocation6 [shape = 'u8[512]{0}', space=vmem, size = 0x400, scoped, tag = 'output window, operand 0, single buffered']
    %6 = vsyncpa [#allocation4], 0
    %7 = vsyncpa [#allocation5], 0
    // Predicated region
    $region2: #{tpu_custom_call.1} parent=1 // pred_check
      _
    $region3: #{tpu_custom_call.1} parent=1 // pred_check_branch
      %9 = sbr.rel (0) target = $region5
    $region4: #{tpu_custom_call.1} parent=1 // pred_region
      %s11 = ssub.s32 128, 128
      %12 = vsyncadd [#allocation4], %s11
      %s14 = sshll.u32 [#allocation3], 4
      %s15 = int_to_ptr.vmem [resolvable:$true] %s14
      %17 = dma.hbm_to_vmem [thread:$0]  %s0, 128, %s15, [#allocation4]
    $region5: #{tpu_custom_call.1} parent=1 // pred_fallthru
      _
    // Predicated region
    $region6: #{tpu_custom_call.1} parent=1 // pred_check
      _
    $region7: #{tpu_custom_call.1} parent=1 // pred_check_branch
      %19 = sbr.rel (0) target = $region9
    $region8: #{tpu_custom_call.1} parent=1 // pred_region
      %20 = dma.done [#allocation4], 128
    $region9: #{tpu_custom_call.1} parent=1 // pred_fallthru
      _
    %p21 = scmp.eq.s32.totalorder 0, 0
    // Predicated region
    $region10: #{tpu_custom_call.1} parent=1 // pred_check
      %p22 = pneg %p21
    $region11: #{tpu_custom_call.1} parent=1 // pred_check_branch
      %24 = sbr.rel (%p22) target = $region13
    $region12: #{tpu_custom_call.1} parent=1 // pred_region
      %vm25 = vcmask 516096
      %26 = vst.msk [vmem:[#allocation2] sm:$0x1] %vm25, 0.0
    $region13: #{tpu_custom_call.1} parent=1 // pred_fallthru
      _
    %v27 = vld [vmem:[#allocation3] sm:$0xff]
    %v28 = vld [vmem:[#allocation2] sm:$0x1]
    %vm29 = vcmask 523264
    %v30 = vsel %vm29, %v27, 0.0
    %v31 = vrot.slane %v30, 4
    %v32 = vadd.f32 %v30, %v31
    %v33 = vrot.slane %v32, 2
    %v34 = vadd.f32 %v32, %v33
    %v35 = vrot.slane %v34, 1
    %v36 = vadd.f32 %v34, %v35
    %v37 = vadd.f32 %v28, %v36
    %vm38 = vcmask 516096
    %39 = vst.msk [vmem:[#allocation2] sm:$0x1] %vm38, %v37
    // Predicated region
    $region14: #{tpu_custom_call.1} parent=1 // pred_check
      %p40 = pneg %p21
    $region15: #{tpu_custom_call.1} parent=1 // pred_check_branch
      %42 = sbr.rel (%p40) target = $region17
    $region16: #{tpu_custom_call.1} parent=1 // pred_region
      %v43 = vld [vmem:[#allocation2] sm:$0x1]
      %v44 = vmul.f32 %v43, 0.125
      %45 = vst.msk [vmem:[#allocation6] sm:$0x1] %vm38, %v44
    $region17: #{tpu_custom_call.1} parent=1 // pred_fallthru
      _
    // Predicated region
    $region18: #{tpu_custom_call.1} parent=1 // pred_check
      _
    $region19: #{tpu_custom_call.1} parent=1 // pred_check_branch
      %47 = sbr.rel (0) target = $region21
    $region20: #{tpu_custom_call.1} parent=1 // pred_region
      %s49 = ssub.s32 16, 16
      %50 = vsyncadd [#allocation5], %s49
      %s52 = sshll.u32 [#allocation6], 4
      %s53 = int_to_ptr.vmem [resolvable:$true] %s52
      %55 = dma.vmem_to_hbm [thread:$0]  %s53, 16, %s1, [#allocation5]
    $region21: #{tpu_custom_call.1} parent=1 // pred_fallthru
      _
    // Predicated region
    $region22: #{tpu_custom_call.1} parent=1 // pred_check
      _
    $region23: #{tpu_custom_call.1} parent=1 // pred_check_branch
      %57 = sbr.rel (0) target = $region25
    $region24: #{tpu_custom_call.1} parent=1 // pred_region
      %58 = dma.done [#allocation5], 16
    $region25: #{tpu_custom_call.1} parent=1 // pred_fallthru
      _
    %59 = vsyncpa [#allocation4], 1
    %60 = vsyncpa [#allocation5], 1

</llo_original>
